<compile_context>
chip_gen: v7x
topology: tpu7x:2x2x1
jax: 0.10.0
libtpu: 0.0.40
codegen_flags: <defaults>
</compile_context>

<pallas_src>
import functools

import jax
import jax.numpy as jnp
from jax import lax
from jax.experimental import pallas as pl
from jax.experimental.pallas import tpu as pltpu


def _cheby_conv_ds_kernel(x_ref, adj_ref, ds_ref, dsdiag_ref, mix_ref, bias_ref,
                          out_ref, *, K):
    # x_ref:      (bb, N, c_in*T)      x laid out as [b, n, (c, l)]
    # adj_ref:    (bb, N, N)
    # ds_ref:     (bb, N, N)
    # dsdiag_ref: (bb, N, 1)           ds[b, q, q]
    # mix_ref:    (K*c_in*T, c_out*T)  folded 1x1-conv weight (kron with I_T)
    # bias_ref:   (1, c_out*T)
    # out_ref:    (bb, N, c_out*T)
    bb, N, CT = x_ref.shape
    OT = out_ref.shape[-1]
    rows = bb * N

    x = x_ref[...]

    # --- k = 0 : Lap_0 = ds*I  ->  per-row diagonal scale (no matmul, no eye) --
    z_parts = [(dsdiag_ref[...] * x).reshape(rows, CT)]

    if K >= 2:
        adj = adj_ref[...]
        ds = ds_ref[...]
        # --- k = 1 : Lap_1 = ds*adj ------------------------------------------
        z = jnp.einsum('bqn,bnm->bqm', ds * adj, x,
                       preferred_element_type=jnp.float32)
        z_parts.append(z.reshape(rows, CT))

    if K >= 3:
        # Chebyshev recursion fused with the graph conv: Lap_k = ds*T_k is
        # consumed immediately and never kept; only T_{k-1}, T_k stay live.
        row_i = lax.broadcasted_iota(jnp.int32, (N, N), 0)
        col_i = lax.broadcasted_iota(jnp.int32, (N, N), 1)
        t_prev = (row_i == col_i).astype(jnp.float32)   # T_0 = I (bcast over b)
        t_cur = adj                                      # T_1 = adj
        for _ in range(2, K):
            t_next = 2.0 * jnp.einsum('bij,bjk->bik', adj, t_cur,
                                      preferred_element_type=jnp.float32) - t_prev
            z = jnp.einsum('bqn,bnm->bqm', ds * t_next, x,
                           preferred_element_type=jnp.float32)
            z_parts.append(z.reshape(rows, CT))
            t_prev, t_cur = t_cur, t_next

    # --- folded 1x1 conv: one deep MXU matmul over all K Chebyshev orders -----
    slab = jnp.concatenate(z_parts, axis=-1) if len(z_parts) > 1 else z_parts[0]
    out2 = jnp.dot(slab, mix_ref[...], preferred_element_type=jnp.float32)
    out2 = out2 + bias_ref[...]                          # broadcast (1, c_out*T)
    out_ref[...] = out2.reshape(bb, N, OT).astype(out_ref.dtype)


def cheby_conv_ds_forward(x, adj, ds, weight, bias, K, *, batch_block=1):
    """x: (B, c_in, N, T); adj, ds: (B, N, N); weight: (c_out, c_in*K) with
    channel index c*K+k (torch view order); bias: (c_out,).
    Returns (B, c_out, N, T).  K >= 1 supported."""
    B, c_in, N, T = x.shape
    c_out = weight.shape[0]
    assert weight.shape[1] == K * c_in

    bb = min(batch_block, B)
    assert B % bb == 0, "batch must be divisible by batch_block"

    # --- layout plumbing (pure JAX, outside the kernel) ----------------------
    # x -> (B, N, c_in*T) with lane index c*T + l
    x_r = jnp.transpose(x, (0, 2, 1, 3)).reshape(B, N, c_in * T).astype(jnp.float32)
    # diag(ds) for the k=0 term (removes one batched matmul per step)
    ds_diag = jnp.diagonal(ds, axis1=-2, axis2=-1).reshape(B, N, 1).astype(jnp.float32)

    # Folded 1x1-conv weight for a single deep contraction over all K orders:
    #   mix[k*c_in*T + c*T + l, o*T + l'] = weight[o, c*K + k] * (l == l')
    w3 = weight.astype(jnp.float32).reshape(c_out, c_in, K)   # [o, c, k]
    wt = jnp.transpose(w3, (2, 1, 0))                         # [k, c, o]
    mix = jnp.einsum('kco,lm->kclom', wt, jnp.eye(T, dtype=jnp.float32))
    mix = mix.reshape(K * c_in * T, c_out * T)
    bias_row = jnp.repeat(bias.astype(jnp.float32), T).reshape(1, c_out * T)

    grid = (B // bb,)

    out_r = pl.pallas_call(
        functools.partial(_cheby_conv_ds_kernel, K=K),
        out_shape=jax.ShapeDtypeStruct((B, N, c_out * T), jnp.float32),
        grid_spec=pltpu.PrefetchScalarGridSpec(
            num_scalar_prefetch=0,
            grid=grid,
            in_specs=[
                pl.BlockSpec((bb, N, c_in * T), lambda b: (b, 0, 0)),
                pl.BlockSpec((bb, N, N), lambda b: (b, 0, 0)),
                pl.BlockSpec((bb, N, N), lambda b: (b, 0, 0)),
                pl.BlockSpec((bb, N, 1), lambda b: (b, 0, 0)),
                # constant index_maps -> fetched once, stay resident
                pl.BlockSpec((K * c_in * T, c_out * T), lambda b: (0, 0)),
                pl.BlockSpec((1, c_out * T), lambda b: (0, 0)),
            ],
            out_specs=pl.BlockSpec((bb, N, c_out * T), lambda b: (b, 0, 0)),
        ),
        compiler_params=pltpu.CompilerParams(
            dimension_semantics=("parallel",),
            vmem_limit_bytes=32 * 1024 * 1024),
    )(x_r, adj.astype(jnp.float32), ds.astype(jnp.float32), ds_diag, mix, bias_row)

    # (B, N, c_out*T) -> (B, c_out, N, T)
    return jnp.transpose(out_r.reshape(B, N, c_out, T), (0, 2, 1, 3))


def cheby_conv_ds_reference(x, adj, ds, weight, bias, K):
    """Pure-JAX reference reproducing the torch forward exactly."""
    B, c_in, N, T = x.shape
    hp = jax.lax.Precision.HIGHEST
    eye = jnp.eye(N, dtype=x.dtype)
    laps = [ds * eye, ds * adj]
    l0 = jnp.broadcast_to(eye, (B, N, N))
    l1 = adj
    for _ in range(2, K):
        l2 = 2.0 * jnp.matmul(adj, l1, precision=hp) - l0
        laps.append(ds * l2)
        l0, l1 = l1, l2
    lap = jnp.stack(laps[:K], axis=1)                    # (B, K, N, N)
    lap = jnp.swapaxes(lap, -1, -2)                      # Lap.transpose(-1, -2)
    xk = jnp.einsum('bcnl,bknq->bckql', x, lap, precision=hp)
    xk = xk.reshape(B, c_in * K, N, T)                   # channel index c*K + k
    out = jnp.einsum('oc,bcnt->bont', weight, xk, precision=hp)
    return out + bias[None, :, None, None]


if __name__ == "__main__":
    B, c_in, c_out, K, num_nodes, tem_size = 2, 4, 8, 3, 16, 16

    key = jax.random.PRNGKey(0)
    k_x, k_adj, k_ds, k_w, k_b = jax.random.split(key, 5)

    x = jax.random.normal(k_x, (B, c_in, num_nodes, tem_size), jnp.float32)
    adj = jax.random.normal(k_adj, (B, num_nodes, num_nodes), jnp.float32) * 0.1
    ds = jax.random.uniform(k_ds, (B, num_nodes, num_nodes), jnp.float32)

    # Conv2d(K*c_in, c_out, 1, 1) parameters (deterministic init)
    bound = (6.0 / (K * c_in + c_out)) ** 0.5
    weight = jax.random.uniform(k_w, (c_out, K * c_in), jnp.float32, -bound, bound)
    bias = jax.random.normal(k_b, (c_out,), jnp.float32) * 0.1

    out = cheby_conv_ds_forward(x, adj, ds, weight, bias, K, batch_block=1)
    out = jax.block_until_ready(out)

    ref = cheby_conv_ds_reference(x, adj, ds, weight, bias, K)
    if not jnp.allclose(out, ref, rtol=1e-4, atol=1e-4):
        max_err = jnp.max(jnp.abs(out - ref))
        raise AssertionError(
            f"Pallas cheby_conv_ds kernel does not match reference (max abs err {max_err})")

    print("KERNEL_OK")
</pallas_src>

<mosaic_0001>
module attributes {stable_mosaic.version = 11 : i64} {
  func.func @_cheby_conv_ds_kernel(%arg0: i32, %arg1: memref<1x16x64xf32, #tpu.memory_space<vmem>>, %arg2: memref<1x16x16xf32, #tpu.memory_space<vmem>>, %arg3: memref<1x16x16xf32, #tpu.memory_space<vmem>>, %arg4: memref<1x16x1xf32, #tpu.memory_space<vmem>>, %arg5: memref<192x128xf32, #tpu.memory_space<vmem>>, %arg6: memref<1x128xf32, #tpu.memory_space<vmem>>, %arg7: memref<1x16x128xf32, #tpu.memory_space<vmem>>) attributes {dimension_semantics = [#tpu.dimension_semantics<parallel>], iteration_bounds = array<i64: 2>, scalar_prefetch = 0 : i64, scratch_operands = 0 : i64, tpu.core_type = #tpu.core_type<tc>, window_params = [{transform_indices = @transform_0, window_bounds = array<i64: 1, 16, 64>}, {transform_indices = @transform_1, window_bounds = array<i64: 1, 16, 16>}, {transform_indices = @transform_2, window_bounds = array<i64: 1, 16, 16>}, {transform_indices = @transform_3, window_bounds = array<i64: 1, 16, 1>}, {pipeline_mode = #tpu.pipeline_mode<synchronous>, transform_indices = @transform_4, window_bounds = array<i64: 192, 128>}, {pipeline_mode = #tpu.pipeline_mode<synchronous>, transform_indices = @transform_5, window_bounds = array<i64: 1, 128>}, {transform_indices = @transform_6, window_bounds = array<i64: 1, 16, 128>}]} {
    %c0 = arith.constant 0 : index
    %c0_0 = arith.constant 0 : index
    %c0_1 = arith.constant 0 : index
    %0 = vector.load %arg1[%c0, %c0_0, %c0_1] : memref<1x16x64xf32, #tpu.memory_space<vmem>>, vector<1x16x64xf32>
    %c0_2 = arith.constant 0 : index
    %c0_3 = arith.constant 0 : index
    %c0_4 = arith.constant 0 : index
    %1 = vector.load %arg4[%c0_2, %c0_3, %c0_4] : memref<1x16x1xf32, #tpu.memory_space<vmem>>, vector<1x16x1xf32>
    %2 = vector.broadcast %1 : vector<1x16x1xf32> to vector<1x16x64xf32>
    %3 = arith.mulf %2, %0 : vector<1x16x64xf32>
    %4 = vector.shape_cast %3 : vector<1x16x64xf32> to vector<16x64xf32>
    %c0_5 = arith.constant 0 : index
    %c0_6 = arith.constant 0 : index
    %c0_7 = arith.constant 0 : index
    %5 = vector.load %arg2[%c0_5, %c0_6, %c0_7] : memref<1x16x16xf32, #tpu.memory_space<vmem>>, vector<1x16x16xf32>
    %c0_8 = arith.constant 0 : index
    %c0_9 = arith.constant 0 : index
    %c0_10 = arith.constant 0 : index
    %6 = vector.load %arg3[%c0_8, %c0_9, %c0_10] : memref<1x16x16xf32, #tpu.memory_space<vmem>>, vector<1x16x16xf32>
    %7 = arith.mulf %6, %5 : vector<1x16x16xf32>
    "tpu.trace_start"() <{level = 10 : i32, message = "bqn,bnm->bqm"}> : () -> ()
    %cst = arith.constant dense<0.000000e+00> : vector<1x16x64xf32>
    %8 = tpu.matmul %7, %0, %cst {dimension_numbers = #tpu.dot_dimension_numbers<[2], [1], [1], [2], [0, 0, 0, 1, 1, 2], [0], [0]>} : vector<1x16x16xf32>, vector<1x16x64xf32>, vector<1x16x64xf32> -> vector<1x16x64xf32>
    "tpu.trace_stop"() : () -> ()
    %9 = vector.shape_cast %8 : vector<1x16x64xf32> to vector<16x64xf32>
    %10 = tpu.iota {dimensions = array<i32: 0>} : vector<16x16xi32>
    %11 = tpu.iota {dimensions = array<i32: 1>} : vector<16x16xi32>
    %12 = arith.cmpi eq, %10, %11 : vector<16x16xi32>
    %13 = arith.extui %12 : vector<16x16xi1> to vector<16x16xi32>
    %14 = arith.sitofp %13 : vector<16x16xi32> to vector<16x16xf32>
    "tpu.trace_start"() <{level = 10 : i32, message = "bij,bjk->bik"}> : () -> ()
    %cst_11 = arith.constant dense<0.000000e+00> : vector<1x16x16xf32>
    %15 = tpu.matmul %5, %5, %cst_11 {dimension_numbers = #tpu.dot_dimension_numbers<[2], [1], [1], [2], [0, 0, 0, 1, 1, 2], [0], [0]>} : vector<1x16x16xf32>, vector<1x16x16xf32>, vector<1x16x16xf32> -> vector<1x16x16xf32>
    "tpu.trace_stop"() : () -> ()
    %cst_12 = arith.constant 2.000000e+00 : f32
    %16 = vector.broadcast %cst_12 : f32 to vector<1x16x16xf32>
    %17 = arith.mulf %16, %15 : vector<1x16x16xf32>
    %18 = vector.shape_cast %14 : vector<16x16xf32> to vector<1x16x16xf32>
    %19 = arith.subf %17, %18 : vector<1x16x16xf32>
    %20 = arith.mulf %6, %19 : vector<1x16x16xf32>
    "tpu.trace_start"() <{level = 10 : i32, message = "bqn,bnm->bqm"}> : () -> ()
    %cst_13 = arith.constant dense<0.000000e+00> : vector<1x16x64xf32>
    %21 = tpu.matmul %20, %0, %cst_13 {dimension_numbers = #tpu.dot_dimension_numbers<[2], [1], [1], [2], [0, 0, 0, 1, 1, 2], [0], [0]>} : vector<1x16x16xf32>, vector<1x16x64xf32>, vector<1x16x64xf32> -> vector<1x16x64xf32>
    "tpu.trace_stop"() : () -> ()
    %22 = vector.shape_cast %21 : vector<1x16x64xf32> to vector<16x64xf32>
    %23 = tpu.concatenate %4, %9, %22 in 1 : vector<16x64xf32>, vector<16x64xf32>, vector<16x64xf32> -> vector<16x192xf32>
    %c0_14 = arith.constant 0 : index
    %c0_15 = arith.constant 0 : index
    %24 = vector.load %arg5[%c0_14, %c0_15] : memref<192x128xf32, #tpu.memory_space<vmem>>, vector<192x128xf32>
    %cst_16 = arith.constant dense<0.000000e+00> : vector<16x128xf32>
    %25 = tpu.matmul %23, %24, %cst_16 {dimension_numbers = #tpu.dot_dimension_numbers<[1], [0], [0], [1], [0, 0, 1, 1], [], []>} : vector<16x192xf32>, vector<192x128xf32>, vector<16x128xf32> -> vector<16x128xf32>
    %c0_17 = arith.constant 0 : index
    %c0_18 = arith.constant 0 : index
    %26 = vector.load %arg6[%c0_17, %c0_18] : memref<1x128xf32, #tpu.memory_space<vmem>>, vector<1x128xf32>
    %27 = vector.broadcast %26 : vector<1x128xf32> to vector<16x128xf32>
    %28 = arith.addf %25, %27 : vector<16x128xf32>
    %29 = vector.shape_cast %28 : vector<16x128xf32> to vector<1x16x128xf32>
    %c0_19 = arith.constant 0 : index
    %c0_20 = arith.constant 0 : index
    %c0_21 = arith.constant 0 : index
    %30 = vector.load %arg7[%c0_19, %c0_20, %c0_21] : memref<1x16x128xf32, #tpu.memory_space<vmem>>, vector<1x16x128xf32>
    tpu.vector_store %arg7[%c0_19, %c0_20, %c0_21], %29 {strides = array<i32>} : memref<1x16x128xf32, #tpu.memory_space<vmem>>, vector<1x16x128xf32>,
    return
  }
  func.func @transform_0(%arg0: i32) -> (i32, i32, i32) {
    %c0_i32 = arith.constant 0 : i32
    %c0_i32_0 = arith.constant 0 : i32
    %c0_i32_1 = arith.constant 0 : i32
    return %arg0, %c0_i32, %c0_i32_0 : i32, i32, i32
  }
  func.func @transform_1(%arg0: i32) -> (i32, i32, i32) {
    %c0_i32 = arith.constant 0 : i32
    %c0_i32_0 = arith.constant 0 : i32
    %c0_i32_1 = arith.constant 0 : i32
    return %arg0, %c0_i32, %c0_i32_0 : i32, i32, i32
  }
  func.func @transform_2(%arg0: i32) -> (i32, i32, i32) {
    %c0_i32 = arith.constant 0 : i32
    %c0_i32_0 = arith.constant 0 : i32
    %c0_i32_1 = arith.constant 0 : i32
    return %arg0, %c0_i32, %c0_i32_0 : i32, i32, i32
  }
  func.func @transform_3(%arg0: i32) -> (i32, i32, i32) {
    %c0_i32 = arith.constant 0 : i32
    %c0_i32_0 = arith.constant 0 : i32
    %c0_i32_1 = arith.constant 0 : i32
    return %arg0, %c0_i32, %c0_i32_0 : i32, i32, i32
  }
  func.func @transform_4(%arg0: i32) -> (i32, i32) {
    %c0_i32 = arith.constant 0 : i32
    %c0_i32_0 = arith.constant 0 : i32
    %c0_i32_1 = arith.constant 0 : i32
    return %c0_i32, %c0_i32_0 : i32, i32
  }
  func.func @transform_5(%arg0: i32) -> (i32, i32) {
    %c0_i32 = arith.constant 0 : i32
    %c0_i32_0 = arith.constant 0 : i32
    %c0_i32_1 = arith.constant 0 : i32
    return %c0_i32, %c0_i32_0 : i32, i32
  }
  func.func @transform_6(%arg0: i32) -> (i32, i32, i32) {
    %c0_i32 = arith.constant 0 : i32
    %c0_i32_0 = arith.constant 0 : i32
    %c0_i32_1 = arith.constant 0 : i32
    return %arg0, %c0_i32, %c0_i32_0 : i32, i32, i32
  }
}

</mosaic_0001>

<llo_original>
// kernel: tpu_custom_call.1
$region0: #{tpu_custom_call.1}
  #allocation0 [shape = 'u32[]', space=smem, size = 0x4, offset = 0x4, fixed_abs, tag = 'smem constant byte address 0x4 - core index']
  #allocation1 [shape = 'u32[144,128]{1,0:T(1,128)}', space=vmem, size = 0x12000, scoped, tag = 'internal scratch']
  %s0 = inlined_call_operand.vmem [shape: f32[2,16,64], index: 0, kind: input, shape index: {}]
  %s1 = inlined_call_operand.hbm [shape: f32[2,16,16], index: 1, kind: input, shape index: {}]
  %s2 = inlined_call_operand.hbm [shape: f32[2,16,16], index: 2, kind: input, shape index: {}]
  %s3 = inlined_call_operand.vmem [shape: f32[2,16,1], index: 3, kind: input, shape index: {}]
  %s4 = inlined_call_operand.hbm [shape: f32[192,128], index: 4, kind: input, shape index: {}]
  %s5 = inlined_call_operand.vmem [shape: f32[1,128], index: 5, kind: input, shape index: {}]
  %s6 = inlined_call_operand.hbm [shape: f32[2,16,128], index: 6, kind: output, shape index: {}]
  %s7 = sld [smem:[#allocation0]]
  $region69: #{tpu_custom_call.1} parent=0
    _
  %s9 = ssub.s32 1, %s7
  %s10 = scalar_select 0, %s9, %s7
  $region1: #{tpu_custom_call.1} parent=0
    #allocation2 [shape = 'u8[16384]{0}', space=vmem, size = 0x4000, scoped, tag = 'input window, operand 1']
    #allocation3 [shape = 's32[2]{0}', space=sflag, size = 0x8, scoped, tag = 'scoped memory for tpu_custom_call.1']
    #allocation4 [shape = 's32[2]{0}', space=sflag, size = 0x8, scoped, tag = 'scoped memory for tpu_custom_call.1']
    #allocation5 [shape = 'u8[16384]{0}', space=vmem, size = 0x4000, scoped, tag = 'input window, operand 2']
    #allocation6 [shape = 's32[2]{0}', space=sflag, size = 0x8, scoped, tag = 'scoped memory for tpu_custom_call.1']
    #allocation7 [shape = 'u8[98304]{0}', space=vmem, size = 0x18000, scoped, tag = 'input window, operand 4, single buffered']
    #allocation8 [shape = 'u8[16384]{0}', space=vmem, size = 0x4000, scoped, tag = 'output window, operand 0']
    %11 = vsyncpa [#allocation3], 0
    %s12 = scalar_lea.sflag [#allocation3], 1
    %13 = vsyncpa %s12, 0
    %14 = vsyncpa [#allocation6], 0
    %s15 = scalar_lea.sflag [#allocation6], 1
    %16 = vsyncpa %s15, 0
    %17 = vsyncpa [#allocation4], 0
    %s18 = scalar_lea.sflag [#allocation4], 1
    %19 = vsyncpa %s18, 0
    loop: start=0, step=1, limit=4
    $region2: #{tpu_custom_call.1} parent=1 // loop_pre_header
      _
    $region3: #{tpu_custom_call.1} parent=1 // loop_header
      %s21 = sphi 0, %s25
      %p22 = scmp.ge.s32.totalorder %s21, 4
      %s31 = sphi 0, %s33
      %s34 = sphi 0, %s31
      %s35 = sphi 0, %s34
      %s51 = sphi 0, %s35
      %s57 = sphi 0, %s59
      %s60 = sphi 0, %s57
      %s61 = sphi 0, %s60
      %s77 = sphi 0, %s61
      %s83 = sphi 0, %s85
      %s86 = sphi 0, %s83
      %s87 = sphi 0, %s86
      %s103 = sphi 0, %s87
      %s109 = sphi 0, %s111
      %s112 = sphi 0, %s109
      %s113 = sphi 0, %s112
      %s129 = sphi 0, %s113
      %s133 = sphi 0, %s133
      %s135 = sphi 0, %s133
      %s136 = sphi 0, %s135
      %s150 = sphi 0, %s136
      %s154 = sphi 0, %s154
      %s156 = sphi 0, %s154
      %s157 = sphi 0, %s156
      %s171 = sphi 0, %s157
      %s177 = sphi 0, %s179
      %s180 = sphi 0, %s177
      %s181 = sphi 0, %s180
      %s197 = sphi 0, %s181
    $region4: #{tpu_custom_call.1} parent=1 // loop_header_branch
      %24 = sbr.rel (%p22) target = $region8
    $region5: #{tpu_custom_call.1} parent=1 // loop_body
      %s26 = ssub.s32 %s21, 1
      %s27 = ssub.s32 %s21, 2
      %s28 = sadd.s32 %s21, 1
      %s29 = ssub.s32 %s21, %s28
      %p30 = scmp.eq.s32.totalorder %s29, 0
      %s32 = sadd.s32 %s31, 1
      %s33 = scalar_select %p30, %s31, %s32
      %p36 = pneg %p30
      %p37 = scmp.eq.s32.totalorder %s21, 1
      %p38 = por %p36, %p37
      %p39 = scmp.ne.s32.totalorder %s31, %s34
      %p40 = scmp.eq.s32.totalorder %s21, 0
      %p41 = por %p39, %p40
      %p42 = scmp.ne.s32.totalorder %s31, %s34
      %p43 = scmp.eq.s32.totalorder %s26, 1
      %p44 = por %p42, %p43
      %p45 = scmp.ne.s32.totalorder %s34, %s35
      %p46 = scmp.eq.s32.totalorder %s26, 0
      %p47 = por %p45, %p46
      %p48 = scmp.ne.s32.totalorder %s34, %s35
      %p49 = scmp.eq.s32.totalorder %s27, 1
      %p50 = por %p48, %p49
      %p52 = scmp.ne.s32.totalorder %s35, %s51
      %p53 = scmp.eq.s32.totalorder %s27, 0
      %p54 = por %p52, %p53
      %s55 = ssub.s32 %s21, %s28
      %p56 = scmp.eq.s32.totalorder %s55, 0
      %s58 = sadd.s32 %s57, 1
      %s59 = scalar_select %p56, %s57, %s58
      %p62 = pneg %p56
      %p63 = scmp.eq.s32.totalorder %s21, 1
      %p64 = por %p62, %p63
      %p65 = scmp.ne.s32.totalorder %s57, %s60
      %p66 = scmp.eq.s32.totalorder %s21, 0
      %p67 = por %p65, %p66
      %p68 = scmp.ne.s32.totalorder %s57, %s60
      %p69 = scmp.eq.s32.totalorder %s26, 1
      %p70 = por %p68, %p69
      %p71 = scmp.ne.s32.totalorder %s60, %s61
      %p72 = scmp.eq.s32.totalorder %s26, 0
      %p73 = por %p71, %p72
      %p74 = scmp.ne.s32.totalorder %s60, %s61
      %p75 = scmp.eq.s32.totalorder %s27, 1
      %p76 = por %p74, %p75
      %p78 = scmp.ne.s32.totalorder %s61, %s77
      %p79 = scmp.eq.s32.totalorder %s27, 0
      %p80 = por %p78, %p79
      %s81 = ssub.s32 %s21, %s28
      %p82 = scmp.eq.s32.totalorder %s81, 0
      %s84 = sadd.s32 %s83, 1
      %s85 = scalar_select %p82, %s83, %s84
      %p88 = pneg %p82
      %p89 = scmp.eq.s32.totalorder %s21, 1
      %p90 = por %p88, %p89
      %p91 = scmp.ne.s32.totalorder %s83, %s86
      %p92 = scmp.eq.s32.totalorder %s21, 0
      %p93 = por %p91, %p92
      %p94 = scmp.ne.s32.totalorder %s83, %s86
      %p95 = scmp.eq.s32.totalorder %s26, 1
      %p96 = por %p94, %p95
      %p97 = scmp.ne.s32.totalorder %s86, %s87
      %p98 = scmp.eq.s32.totalorder %s26, 0
      %p99 = por %p97, %p98
      %p100 = scmp.ne.s32.totalorder %s86, %s87
      %p101 = scmp.eq.s32.totalorder %s27, 1
      %p102 = por %p100, %p101
      %p104 = scmp.ne.s32.totalorder %s87, %s103
      %p105 = scmp.eq.s32.totalorder %s27, 0
      %p106 = por %p104, %p105
      %s107 = ssub.s32 %s21, %s28
      %p108 = scmp.eq.s32.totalorder %s107, 0
      %s110 = sadd.s32 %s109, 1
      %s111 = scalar_select %p108, %s109, %s110
      %p114 = pneg %p108
      %p115 = scmp.eq.s32.totalorder %s21, 1
      %p116 = por %p114, %p115
      %p117 = scmp.ne.s32.totalorder %s109, %s112
      %p118 = scmp.eq.s32.totalorder %s21, 0
      %p119 = por %p117, %p118
      %p120 = scmp.ne.s32.totalorder %s109, %s112
      %p121 = scmp.eq.s32.totalorder %s26, 1
      %p122 = por %p120, %p121
      %p123 = scmp.ne.s32.totalorder %s112, %s113
      %p124 = scmp.eq.s32.totalorder %s26, 0
      %p125 = por %p123, %p124
      %p126 = scmp.ne.s32.totalorder %s112, %s113
      %p127 = scmp.eq.s32.totalorder %s27, 1
      %p128 = por %p126, %p127
      %p130 = scmp.ne.s32.totalorder %s113, %s129
      %p131 = scmp.eq.s32.totalorder %s27, 0
      %p132 = por %p130, %p131
      %s134 = sadd.s32 %s133, 1
      %p137 = scmp.eq.s32.totalorder %s21, 1
      %p138 = scmp.ne.s32.totalorder %s133, %s135
      %p139 = scmp.eq.s32.totalorder %s21, 0
      %p140 = por %p138, %p139
      %p141 = scmp.ne.s32.totalorder %s133, %s135
      %p142 = scmp.eq.s32.totalorder %s26, 1
      %p143 = por %p141, %p142
      %p144 = scmp.ne.s32.totalorder %s135, %s136
      %p145 = scmp.eq.s32.totalorder %s26, 0
      %p146 = por %p144, %p145
      %p147 = scmp.ne.s32.totalorder %s135, %s136
      %p148 = scmp.eq.s32.totalorder %s27, 1
      %p149 = por %p147, %p148
      %p151 = scmp.ne.s32.totalorder %s136, %s150
      %p152 = scmp.eq.s32.totalorder %s27, 0
      %p153 = por %p151, %p152
      %s155 = sadd.s32 %s154, 1
      %p158 = scmp.eq.s32.totalorder %s21, 1
      %p159 = scmp.ne.s32.totalorder %s154, %s156
      %p160 = scmp.eq.s32.totalorder %s21, 0
      %p161 = por %p159, %p160
      %p162 = scmp.ne.s32.totalorder %s154, %s156
      %p163 = scmp.eq.s32.totalorder %s26, 1
      %p164 = por %p162, %p163
      %p165 = scmp.ne.s32.totalorder %s156, %s157
      %p166 = scmp.eq.s32.totalorder %s26, 0
      %p167 = por %p165, %p166
      %p168 = scmp.ne.s32.totalorder %s156, %s157
      %p169 = scmp.eq.s32.totalorder %s27, 1
      %p170 = por %p168, %p169
      %p172 = scmp.ne.s32.totalorder %s157, %s171
      %p173 = scmp.eq.s32.totalorder %s27, 0
      %p174 = por %p172, %p173
      %s175 = ssub.s32 %s21, %s28
      %p176 = scmp.eq.s32.totalorder %s175, 0
      %s178 = sadd.s32 %s177, 1
      %s179 = scalar_select %p176, %s177, %s178
      %p182 = pneg %p176
      %p183 = scmp.eq.s32.totalorder %s21, 1
      %p184 = por %p182, %p183
      %p185 = scmp.ne.s32.totalorder %s177, %s180
      %p186 = scmp.eq.s32.totalorder %s21, 0
      %p187 = por %p185, %p186
      %p188 = scmp.ne.s32.totalorder %s177, %s180
      %p189 = scmp.eq.s32.totalorder %s26, 1
      %p190 = por %p188, %p189
      %p191 = scmp.ne.s32.totalorder %s180, %s181
      %p192 = scmp.eq.s32.totalorder %s26, 0
      %p193 = por %p191, %p192
      %p194 = scmp.ne.s32.totalorder %s180, %s181
      %p195 = scmp.eq.s32.totalorder %s27, 1
      %p196 = por %p194, %p195
      %p198 = scmp.ne.s32.totalorder %s181, %s197
      %p199 = scmp.eq.s32.totalorder %s27, 0
      %p200 = por %p198, %p199
      %p201 = scmp.le.s32.totalorder 1, %s21
      %p202 = scmp.lt.s32.totalorder %s21, 3
      %p203 = pnand %p201, %p202
      %p204 = pneg %p203
      // Predicated region
      $region9: #{tpu_custom_call.1} parent=5 // pred_check
        _
      $region10: #{tpu_custom_call.1} parent=5 // pred_check_branch
        %206 = sbr.rel (%p203) target = $region12
      $region11: #{tpu_custom_call.1} parent=5 // pred_region
        %s207 = ssub.s32 %s21, 1
        // Predicated region
        $region13: #{tpu_custom_call.1} parent=11 // pred_check
          %p208 = pneg %p146
        $region14: #{tpu_custom_call.1} parent=11 // pred_check_branch
          %210 = sbr.rel (%p208) target = $region16
        $region15: #{tpu_custom_call.1} parent=11 // pred_region
          %s212 = ssub.s32 3072, 3072
          %213 = vsyncadd [#allocation6], %s212
          %s214 = sshll.u32 [#allocation7], 4
          %s215 = int_to_ptr.vmem [resolvable:$true] %s214
          %220 = dma.hbm_to_vmem [thread:$0]  %s4, 3072, %s215, [#allocation6], 128, 128, 8
        $region16: #{tpu_custom_call.1} parent=11 // pred_fallthru
          _
        // Predicated region
        $region17: #{tpu_custom_call.1} parent=11 // pred_check
          %p221 = pneg %p167
        $region18: #{tpu_custom_call.1} parent=11 // pred_check_branch
          %223 = sbr.rel (%p221) target = $region20
        $region19: #{tpu_custom_call.1} parent=11 // pred_region
          _
        $region20: #{tpu_custom_call.1} parent=11 // pred_fallthru
          _
      $region12: #{tpu_custom_call.1} parent=5 // pred_fallthru
        _
      %p224 = scmp.lt.s32.totalorder %s21, 2
      // Predicated region
      $region21: #{tpu_custom_call.1} parent=5 // pred_check
        %p225 = pneg %p224
      $region22: #{tpu_custom_call.1} parent=5 // pred_check_branch
        %227 = sbr.rel (%p225) target = $region24
      $region23: #{tpu_custom_call.1} parent=5 // pred_region
        // Predicated region
        $region25: #{tpu_custom_call.1} parent=23 // pred_check
          %p228 = pneg %p41
        $region26: #{tpu_custom_call.1} parent=23 // pred_check_branch
          %230 = sbr.rel (%p228) target = $region28
        $region27: #{tpu_custom_call.1} parent=23 // pred_region
          %p231 = scmp.lt.s32.totalorder %s21, 1
          %s232 = scalar_select %p231, %s21, 1
          %s233 = smul.addr %s232, 2
          %s234 = smul.addr %s233, 8
          %s235 = scalar_lea.vmem %s0, %s234
        $region28: #{tpu_custom_call.1} parent=23 // pred_fallthru
          _
        // Predicated region
        $region29: #{tpu_custom_call.1} parent=23 // pred_check
          %p236 = pneg %p67
        $region30: #{tpu_custom_call.1} parent=23 // pred_check_branch
          %238 = sbr.rel (%p236) target = $region32
        $region31: #{tpu_custom_call.1} parent=23 // pred_region
          %s239 = sand.u32 %s57, 1
          %s240 = scalar_lea.sflag [#allocation3], %s239
          %s241 = sand.u32 %s57, 1
          %s242 = smul.addr %s241, 16
          %s243 = scalar_lea.vmem [#allocation2], %s242
          %s245 = ssub.s32 256, 256
          %246 = vsyncadd %s240, %s245
          %s247 = smul.addr %s21, 2
          %s248 = smul.addr %s247, 128
          %s249 = scalar_lea.hbm %s1, %s248
          %s250 = sshll.u32 %s243, 4
          %s251 = int_to_ptr.vmem [resolvable:$true] %s250
          %256 = dma.hbm_to_vmem [thread:$0]  %s249, 256, %s251, %s240, 128, 128, 8
        $region32: #{tpu_custom_call.1} parent=23 // pred_fallthru
          _
        // Predicated region
        $region33: #{tpu_custom_call.1} parent=23 // pred_check
          %p257 = pneg %p93
        $region34: #{tpu_custom_call.1} parent=23 // pred_check_branch
          %259 = sbr.rel (%p257) target = $region36
        $region35: #{tpu_custom_call.1} parent=23 // pred_region
          %s260 = sand.u32 %s21, 1
          %s261 = scalar_lea.sflag [#allocation6], %s260
          %s262 = sand.u32 %s83, 1
          %s263 = smul.addr %s262, 16
          %s264 = scalar_lea.vmem [#allocation5], %s263
          %s266 = ssub.s32 256, 256
          %267 = vsyncadd %s261, %s266
          %s268 = smul.addr %s21, 2
          %s269 = smul.addr %s268, 128
          %s270 = scalar_lea.hbm %s2, %s269
          %s271 = sshll.u32 %s264, 4
          %s272 = int_to_ptr.vmem [resolvable:$true] %s271
          %277 = dma.hbm_to_vmem [thread:$0]  %s270, 256, %s272, %s261, 128, 128, 8
        $region36: #{tpu_custom_call.1} parent=23 // pred_fallthru
          _
        // Predicated region
        $region37: #{tpu_custom_call.1} parent=23 // pred_check
          %p278 = pneg %p119
        $region38: #{tpu_custom_call.1} parent=23 // pred_check_branch
          %280 = sbr.rel (%p278) target = $region40
        $region39: #{tpu_custom_call.1} parent=23 // pred_region
          %p281 = scmp.lt.s32.totalorder %s21, 1
          %s282 = scalar_select %p281, %s21, 1
          %s283 = smul.addr %s282, 2
          %s284 = smul.addr %s283, 8
          %s285 = scalar_lea.vmem %s3, %s284
        $region40: #{tpu_custom_call.1} parent=23 // pred_fallthru
          _
      $region24: #{tpu_custom_call.1} parent=5 // pred_fallthru
        _
      %p286 = scmp.le.s32.totalorder 1, %s21
      %p287 = scmp.lt.s32.totalorder %s21, 3
      %p288 = pnand %p286, %p287
      %p289 = pneg %p288
      // Predicated region
      $region41: #{tpu_custom_call.1} parent=5 // pred_check
        _
      $region42: #{tpu_custom_call.1} parent=5 // pred_check_branch
        %291 = sbr.rel (%p288) target = $region44
      $region43: #{tpu_custom_call.1} parent=5 // pred_region
        %s292 = ssub.s32 %s21, 1
        %s293 = sand.u32 %s60, 1
        %s294 = scalar_lea.sflag [#allocation3], %s293
        %s295 = sand.u32 %s60, 1
        %s296 = smul.addr %s295, 16
        %s297 = scalar_lea.vmem [#allocation2], %s296
        // Predicated region
        $region45: #{tpu_custom_call.1} parent=43 // pred_check
          %p298 = pneg %p73
        $region46: #{tpu_custom_call.1} parent=43 // pred_check_branch
          %300 = sbr.rel (%p298) target = $region48
        $region47: #{tpu_custom_call.1} parent=43 // pred_region
          %301 = dma.done %s294, 256
        $region48: #{tpu_custom_call.1} parent=43 // pred_fallthru
          _
        %s302 = sand.u32 %s26, 1
        %s303 = scalar_lea.sflag [#allocation6], %s302
        %s304 = sand.u32 %s86, 1
        %s305 = smul.addr %s304, 16
        %s306 = scalar_lea.vmem [#allocation5], %s305
        // Predicated region
        $region49: #{tpu_custom_call.1} parent=43 // pred_check
          %p307 = pneg %p99
        $region50: #{tpu_custom_call.1} parent=43 // pred_check_branch
          %309 = sbr.rel (%p307) target = $region52
        $region51: #{tpu_custom_call.1} parent=43 // pred_region
          %310 = dma.done %s303, 256
        $region52: #{tpu_custom_call.1} parent=43 // pred_fallthru
          _
        // Predicated region
        $region53: #{tpu_custom_call.1} parent=43 // pred_check
          %p311 = pneg %p146
        $region54: #{tpu_custom_call.1} parent=43 // pred_check_branch
          %313 = sbr.rel (%p311) target = $region56
        $region55: #{tpu_custom_call.1} parent=43 // pred_region
          %314 = dma.done [#allocation6], 3072
        $region56: #{tpu_custom_call.1} parent=43 // pred_fallthru
          _
        %p315 = scmp.lt.s32.totalorder %s26, 1
        %s316 = scalar_select %p315, %s26, 1
        %s317 = smul.addr %s316, 2
        %s318 = smul.addr %s317, 8
        %s319 = scalar_lea.vmem %s0, %s318
        %p320 = pneg %p47
        %p321 = pneg %p44
        %s322 = sand.u32 %s60, 1
        %s323 = scalar_lea.sflag [#allocation3], %s322
        %s324 = sand.u32 %s60, 1
        %s325 = smul.addr %s324, 16
        %s326 = scalar_lea.vmem [#allocation2], %s325
        %p327 = pneg %p73
        %p328 = pneg %p70
        %s329 = sand.u32 %s26, 1
        %s330 = scalar_lea.sflag [#allocation6], %s329
        %s331 = sand.u32 %s86, 1
        %s332 = smul.addr %s331, 16
        %s333 = scalar_lea.vmem [#allocation5], %s332
        %p334 = pneg %p99
        %p335 = pneg %p96
        %p336 = scmp.lt.s32.totalorder %s26, 1
        %s337 = scalar_select %p336, %s26, 1
        %s338 = smul.addr %s337, 2
        %s339 = smul.addr %s338, 8
        %s340 = scalar_lea.vmem %s3, %s339
        %p341 = pneg %p125
        %p342 = pneg %p122
        %p343 = pneg %p146
        %p344 = pneg %p143
        %p345 = pneg %p167
        %p346 = pneg %p164
        %p347 = pneg %p193
        %p348 = pneg %p190
        %s349 = sand.u32 %s180, 1
        %s350 = scalar_lea.sflag [#allocation4], %s349
        %s351 = sand.u32 %s180, 1
        %s352 = smul.addr %s351, 16
        %s353 = scalar_lea.vmem [#allocation8], %s352
        %p354 = scmp.lt.s32.totalorder %s26, 1
        %s355 = scalar_select %p354, %s26, 1
        %s356 = smul.addr %s355, 2
        %s357 = smul.addr %s356, 8
        %s358 = scalar_lea.vmem %s0, %s357
        %p359 = scmp.lt.s32.totalorder %s26, 1
        %s360 = scalar_select %p359, %s26, 1
        %s361 = smul.addr %s360, 2
        %s362 = smul.addr %s361, 8
        %s363 = scalar_lea.vmem %s3, %s362
        %v364 = vld [vmem:[%s358] sm:$0xff]
        %v365 = vld [vmem:[%s358 + $0x8] sm:$0xff]
        %v366 = vld [vmem:[%s363] sm:$0xff]
        %v367 = vld [vmem:[%s363 + $0x8] sm:$0xff]
        %369 = vset.pattern.permute.xlu0 0
        %370 = vperm.xlu0 %369, %v366
        %v371 = vpop.permute.xlu0 %370
        %374 = vset.pattern.permute.xlu0 0
        %375 = vperm.xlu0 %374, %v367
        %v376 = vpop.permute.xlu0 %375
        %v378 = vmul.f32 %v371, %v364
        %v379 = vmul.f32 %v376, %v365
        %v380 = vld [vmem:[%s297] sm:$0xff]
        %v381 = vld [vmem:[%s297 + $0x8] sm:$0xff]
        %v382 = vld [vmem:[%s306] sm:$0xff]
        %v383 = vld [vmem:[%s306 + $0x8] sm:$0xff]
        %v384 = vmul.f32 %v382, %v380
        %v385 = vmul.f32 %v383, %v381
        %vm386 = vcmask 130048
        %v388 = vsel %vm386, %v384, 0
        %v391 = vsel %vm386, %v385, 0
        %393 = vmatprep.subr.mxu0 0.0
        %394 = vmatpush1.msra.mxu0 %v364
        %395 = vmatprep.subr.mxu0 0.0
        %396 = vmatpush1.msra.mxu0 %v365
        %397 = vmatprep.subr.mxu0 0.0
        %398 = vmatpush1.msra.mxu0 0.0
        %399 = vmatprep.subr.mxu0 0.0
        %400 = vmatpush1.msra.mxu0 0.0
        %401 = vmatprep.subr.mxu0 0.0
        %402 = vmatpush1.msra.mxu0 0.0
        %403 = vmatprep.subr.mxu0 0.0
        %404 = vmatpush1.msra.mxu0 0.0
        %405 = vmatprep.subr.mxu0 0.0
        %406 = vmatpush1.msra.mxu0 0.0
        %407 = vmatprep.subr.mxu0 0.0
        %408 = vmatpush1.msra.mxu0 0.0
        %409 = vmatprep.subr.mxu0 0.0
        %410 = vmatpush1.msra.mxu0 0.0
        %411 = vmatprep.subr.mxu0 0.0
        %412 = vmatpush1.msra.mxu0 0.0
        %413 = vmatprep.subr.mxu0 0.0
        %414 = vmatpush1.msra.mxu0 0.0
        %415 = vmatprep.subr.mxu0 0.0
        %416 = vmatpush1.msra.mxu0 0.0
        %417 = vmatprep.subr.mxu0 0.0
        %418 = vmatpush1.msra.mxu0 0.0
        %419 = vmatprep.subr.mxu0 0.0
        %420 = vmatpush1.msra.mxu0 0.0
        %421 = vmatprep.subr.mxu0 0.0
        %422 = vmatpush1.msra.mxu0 0.0
        %423 = vmatprep.subr.mxu0 0.0
        %424 = vmatpush1.msra.mxu0 0.0
        %425 = vmatprep.subr.mxu0 0.0
        %426 = vmatpush1.msra.mxu0 0.0
        %427 = vmatprep.subr.mxu0 0.0
        %428 = vmatpush1.msra.mxu0 0.0
        %429 = vmatprep.subr.mxu0 0.0
        %430 = vmatpush1.msra.mxu0 0.0
        %431 = vmatprep.subr.mxu0 0.0
        %432 = vmatpush1.msra.mxu0 0.0
        %433 = vmatprep.subr.mxu0 0.0
        %434 = vmatpush1.msra.mxu0 0.0
        %435 = vmatprep.subr.mxu0 0.0
        %436 = vmatpush1.msra.mxu0 0.0
        %437 = vmatprep.subr.mxu0 0.0
        %438 = vmatpush1.msra.mxu0 0.0
        %439 = vmatprep.subr.mxu0 0.0
        %440 = vmatpush1.msra.mxu0 0.0
        %441 = vmatprep.subr.mxu0 0.0
        %442 = vmatpush1.msra.mxu0 0.0
        %443 = vmatprep.subr.mxu0 0.0
        %444 = vmatpush1.msra.mxu0 0.0
        %445 = vmatprep.subr.mxu0 0.0
        %446 = vmatpush1.msra.mxu0 0.0
        %447 = vmatprep.subr.mxu0 0.0
        %448 = vmatpush1.msra.mxu0 0.0
        %449 = vmatprep.subr.mxu0 0.0
        %450 = vmatpush1.msra.mxu0 0.0
        %451 = vmatprep.subr.mxu0 0.0
        %452 = vmatpush1.msra.mxu0 0.0
        %453 = vmatprep.subr.mxu0 0.0
        %454 = vmatpush1.msra.mxu0 0.0
        %455 = vmatprep.subr.mxu0 0.0
        %456 = vmatpush1.msra.mxu0 0.0
        %457 = vmatprep.mubr.f32.mxu0 0.0
        %458 = vmatmul.mubr.f32.gmra.mrb[0].mxu0 %v388
        %v459 = vpop.f32.mrb[0].mxu0
        %v460 = vadd.f32 0.0, %v459
        %v461 = vpop.f32.mrb[0].mxu0
        %462 = vmatprep.mubr.f32.mxu0 0.0
        %463 = vmatmul.mubr.f32.gmra.mrb[0].mxu0 %v391
        %v464 = vpop.f32.mrb[0].mxu0
        %v465 = vadd.f32 0.0, %v464
        %v466 = vpop.f32.mrb[0].mxu0
        %467 = vdwg.mxu0
        %v468 = vlaneseq
        %v469 = vshrl.u32 %v468, 7
        %v470 = vadd.s32 %v469, 8
        %v471 = vlaneseq
        %v472 = vand.u32 %v471, 127
        %vm473 = vcmp.eq.s32.totalorder %v469, %v472
        %vm474 = vcmp.eq.s32.totalorder %v470, %v472
        %v475 = vsel %vm473, 1, 0
        %v476 = vsel %vm474, 1, 0
        %v477 = vcvt.s32.f32 %v475
        %v478 = vcvt.s32.f32 %v476
        %v480 = vsel %vm386, %v380, 0
        %v483 = vsel %vm386, %v381, 0
        %485 = vmatprep.subr.mxu0 0.0
        %486 = vmatpush1.msra.mxu0 %v380
        %487 = vmatprep.subr.mxu0 0.0
        %488 = vmatpush1.msra.mxu0 %v381
        %489 = vmatprep.subr.mxu0 0.0
        %490 = vmatpush1.msra.mxu0 0.0
        %491 = vmatprep.subr.mxu0 0.0
        %492 = vmatpush1.msra.mxu0 0.0
        %493 = vmatprep.subr.mxu0 0.0
        %494 = vmatpush1.msra.mxu0 0.0
        %495 = vmatprep.subr.mxu0 0.0
        %496 = vmatpush1.msra.mxu0 0.0
        %497 = vmatprep.subr.mxu0 0.0
        %498 = vmatpush1.msra.mxu0 0.0
        %499 = vmatprep.subr.mxu0 0.0
        %500 = vmatpush1.msra.mxu0 0.0
        %501 = vmatprep.subr.mxu0 0.0
        %502 = vmatpush1.msra.mxu0 0.0
        %503 = vmatprep.subr.mxu0 0.0
        %504 = vmatpush1.msra.mxu0 0.0
        %505 = vmatprep.subr.mxu0 0.0
        %506 = vmatpush1.msra.mxu0 0.0
        %507 = vmatprep.subr.mxu0 0.0
        %508 = vmatpush1.msra.mxu0 0.0
        %509 = vmatprep.subr.mxu0 0.0
        %510 = vmatpush1.msra.mxu0 0.0
        %511 = vmatprep.subr.mxu0 0.0
        %512 = vmatpush1.msra.mxu0 0.0
        %513 = vmatprep.subr.mxu0 0.0
        %514 = vmatpush1.msra.mxu0 0.0
        %515 = vmatprep.subr.mxu0 0.0
        %516 = vmatpush1.msra.mxu0 0.0
        %517 = vmatprep.subr.mxu0 0.0
        %518 = vmatpush1.msra.mxu0 0.0
        %519 = vmatprep.subr.mxu0 0.0
        %520 = vmatpush1.msra.mxu0 0.0
        %521 = vmatprep.subr.mxu0 0.0
        %522 = vmatpush1.msra.mxu0 0.0
        %523 = vmatprep.subr.mxu0 0.0
        %524 = vmatpush1.msra.mxu0 0.0
        %525 = vmatprep.subr.mxu0 0.0
        %526 = vmatpush1.msra.mxu0 0.0
        %527 = vmatprep.subr.mxu0 0.0
        %528 = vmatpush1.msra.mxu0 0.0
        %529 = vmatprep.subr.mxu0 0.0
        %530 = vmatpush1.msra.mxu0 0.0
        %531 = vmatprep.subr.mxu0 0.0
        %532 = vmatpush1.msra.mxu0 0.0
        %533 = vmatprep.subr.mxu0 0.0
        %534 = vmatpush1.msra.mxu0 0.0
        %535 = vmatprep.subr.mxu0 0.0
        %536 = vmatpush1.msra.mxu0 0.0
        %537 = vmatprep.subr.mxu0 0.0
        %538 = vmatpush1.msra.mxu0 0.0
        %539 = vmatprep.subr.mxu0 0.0
        %540 = vmatpush1.msra.mxu0 0.0
        %541 = vmatprep.subr.mxu0 0.0
        %542 = vmatpush1.msra.mxu0 0.0
        %543 = vmatprep.subr.mxu0 0.0
        %544 = vmatpush1.msra.mxu0 0.0
        %545 = vmatprep.subr.mxu0 0.0
        %546 = vmatpush1.msra.mxu0 0.0
        %547 = vmatprep.subr.mxu0 0.0
        %548 = vmatpush1.msra.mxu0 0.0
        %549 = vmatprep.mubr.f32.mxu0 0.0
        %550 = vmatmul.mubr.f32.gmra.mrb[0].mxu0 %v480
        %v551 = vpop.f32.mrb[0].mxu0
        %v552 = vadd.f32 0.0, %v551
        %v553 = vpop.f32.mrb[0].mxu0
        %554 = vmatprep.mubr.f32.mxu0 0.0
        %555 = vmatmul.mubr.f32.gmra.mrb[0].mxu0 %v483
        %v556 = vpop.f32.mrb[0].mxu0
        %v557 = vadd.f32 0.0, %v556
        %v558 = vpop.f32.mrb[0].mxu0
        %559 = vdwg.mxu0
        %v560 = vmul.f32 %v552, 2.0
        %v561 = vmul.f32 %v557, 2.0
        %v562 = vsub.f32 %v560, %v477
        %v563 = vsub.f32 %v561, %v478
        %v564 = vmul.f32 %v382, %v562
        %v565 = vmul.f32 %v383, %v563
        %v567 = vsel %vm386, %v564, 0
        %v570 = vsel %vm386, %v565, 0
        %572 = vmatprep.subr.mxu0 0.0
        %573 = vmatpush1.msra.mxu0 %v364
        %574 = vmatprep.subr.mxu0 0.0
        %575 = vmatpush1.msra.mxu0 %v365
        %576 = vmatprep.subr.mxu0 0.0
        %577 = vmatpush1.msra.mxu0 0.0
        %578 = vmatprep.subr.mxu0 0.0
        %579 = vmatpush1.msra.mxu0 0.0
        %580 = vmatprep.subr.mxu0 0.0
        %581 = vmatpush1.msra.mxu0 0.0
        %582 = vmatprep.subr.mxu0 0.0
        %583 = vmatpush1.msra.mxu0 0.0
        %584 = vmatprep.subr.mxu0 0.0
        %585 = vmatpush1.msra.mxu0 0.0
        %586 = vmatprep.subr.mxu0 0.0
        %587 = vmatpush1.msra.mxu0 0.0
        %588 = vmatprep.subr.mxu0 0.0
        %589 = vmatpush1.msra.mxu0 0.0
        %590 = vmatprep.subr.mxu0 0.0
        %591 = vmatpush1.msra.mxu0 0.0
        %592 = vmatprep.subr.mxu0 0.0
        %593 = vmatpush1.msra.mxu0 0.0
        %594 = vmatprep.subr.mxu0 0.0
        %595 = vmatpush1.msra.mxu0 0.0
        %596 = vmatprep.subr.mxu0 0.0
        %597 = vmatpush1.msra.mxu0 0.0
        %598 = vmatprep.subr.mxu0 0.0
        %599 = vmatpush1.msra.mxu0 0.0
        %600 = vmatprep.subr.mxu0 0.0
        %601 = vmatpush1.msra.mxu0 0.0
        %602 = vmatprep.subr.mxu0 0.0
        %603 = vmatpush1.msra.mxu0 0.0
        %604 = vmatprep.subr.mxu0 0.0
        %605 = vmatpush1.msra.mxu0 0.0
        %606 = vmatprep.subr.mxu0 0.0
        %607 = vmatpush1.msra.mxu0 0.0
        %608 = vmatprep.subr.mxu0 0.0
        %609 = vmatpush1.msra.mxu0 0.0
        %610 = vmatprep.subr.mxu0 0.0
        %611 = vmatpush1.msra.mxu0 0.0
        %612 = vmatprep.subr.mxu0 0.0
        %613 = vmatpush1.msra.mxu0 0.0
        %614 = vmatprep.subr.mxu0 0.0
        %615 = vmatpush1.msra.mxu0 0.0
        %616 = vmatprep.subr.mxu0 0.0
        %617 = vmatpush1.msra.mxu0 0.0
        %618 = vmatprep.subr.mxu0 0.0
        %619 = vmatpush1.msra.mxu0 0.0
        %620 = vmatprep.subr.mxu0 0.0
        %621 = vmatpush1.msra.mxu0 0.0
        %622 = vmatprep.subr.mxu0 0.0
        %623 = vmatpush1.msra.mxu0 0.0
        %624 = vmatprep.subr.mxu0 0.0
        %625 = vmatpush1.msra.mxu0 0.0
        %626 = vmatprep.subr.mxu0 0.0
        %627 = vmatpush1.msra.mxu0 0.0
        %628 = vmatprep.subr.mxu0 0.0
        %629 = vmatpush1.msra.mxu0 0.0
        %630 = vmatprep.subr.mxu0 0.0
        %631 = vmatpush1.msra.mxu0 0.0
        %632 = vmatprep.subr.mxu0 0.0
        %633 = vmatpush1.msra.mxu0 0.0
        %634 = vmatprep.subr.mxu0 0.0
        %635 = vmatpush1.msra.mxu0 0.0
        %636 = vmatprep.mubr.f32.mxu0 0.0
        %637 = vmatmul.mubr.f32.gmra.mrb[0].mxu0 %v567
        %v638 = vpop.f32.mrb[0].mxu0
        %v639 = vadd.f32 0.0, %v638
        %v640 = vpop.f32.mrb[0].mxu0
        %641 = vmatprep.mubr.f32.mxu0 0.0
        %642 = vmatmul.mubr.f32.gmra.mrb[0].mxu0 %v570
        %v643 = vpop.f32.mrb[0].mxu0
        %v644 = vadd.f32 0.0, %v643
        %v645 = vpop.f32.mrb[0].mxu0
        %646 = vdwg.mxu0
        %649 = vrot.lane.b32.xlu0 %v460, 64
        %v650 = vpop.permute.xlu0 %649
        %651 = vrot.lane.b32.xlu0 %v465, 64
        %v652 = vpop.permute.xlu0 %651
        %vm655 = vcmask 523264
        %v656 = vsel %vm655, %v378, %v650
        %v657 = vsel %vm655, %v379, %v652
        %v658 = vld [vmem:[#allocation7] sm:$0xff]
        %v659 = vld [vmem:[#allocation7 + $0x8] sm:$0xff]
        %v660 = vld [vmem:[#allocation7 + $0x10] sm:$0xff]
        %v661 = vld [vmem:[#allocation7 + $0x18] sm:$0xff]
        %v662 = vld [vmem:[#allocation7 + $0x20] sm:$0xff]
        %v663 = vld [vmem:[#allocation7 + $0x28] sm:$0xff]
        %v664 = vld [vmem:[#allocation7 + $0x30] sm:$0xff]
        %v665 = vld [vmem:[#allocation7 + $0x38] sm:$0xff]
        %v666 = vld [vmem:[#allocation7 + $0x40] sm:$0xff]
        %v667 = vld [vmem:[#allocation7 + $0x48] sm:$0xff]
        %v668 = vld [vmem:[#allocation7 + $0x50] sm:$0xff]
        %v669 = vld [vmem:[#allocation7 + $0x58] sm:$0xff]
        %v670 = vld [vmem:[#allocation7 + $0x60] sm:$0xff]
        %v671 = vld [vmem:[#allocation7 + $0x68] sm:$0xff]
        %v672 = vld [vmem:[#allocation7 + $0x70] sm:$0xff]
        %v673 = vld [vmem:[#allocation7 + $0x78] sm:$0xff]
        %v674 = vld [vmem:[#allocation7 + $0x80] sm:$0xff]
        %v675 = vld [vmem:[#allocation7 + $0x88] sm:$0xff]
        %v676 = vld [vmem:[#allocation7 + $0x90] sm:$0xff]
        %v677 = vld [vmem:[#allocation7 + $0x98] sm:$0xff]
        %v678 = vld [vmem:[#allocation7 + $0xa0] sm:$0xff]
        %v679 = vld [vmem:[#allocation7 + $0xa8] sm:$0xff]
        %v680 = vld [vmem:[#allocation7 + $0xb0] sm:$0xff]
        %v681 = vld [vmem:[#allocation7 + $0xb8] sm:$0xff]
        %v682 = vld [vmem:[%s5] sm:$0x1]
        %v684 = vlaneseq
        %v685 = vshrl.u32 %v684, 7
        %v686 = vsub.s32 0, %v685
        %v687 = vrot.slane %v682, %v686
        %v690 = vsel %vm655, %v639, 0
        %v693 = vsel %vm655, %v644, 0
        %695 = vmatprep.subr.mxu0 0.0
        %696 = vmatpush1.msra.mxu0 %v658
        %697 = vmatprep.subr.mxu0 0.0
        %698 = vmatpush1.msra.mxu0 %v659
        %699 = vmatprep.subr.mxu0 0.0
        %700 = vmatpush1.msra.mxu0 %v660
        %701 = vmatprep.subr.mxu0 0.0
        %702 = vmatpush1.msra.mxu0 %v661
        %703 = vmatprep.subr.mxu0 0.0
        %704 = vmatpush1.msra.mxu0 %v662
        %705 = vmatprep.subr.mxu0 0.0
        %706 = vmatpush1.msra.mxu0 %v663
        %707 = vmatprep.subr.mxu0 0.0
        %708 = vmatpush1.msra.mxu0 %v664
        %709 = vmatprep.subr.mxu0 0.0
        %710 = vmatpush1.msra.mxu0 %v665
        %711 = vmatprep.subr.mxu0 0.0
        %712 = vmatpush1.msra.mxu0 %v666
        %713 = vmatprep.subr.mxu0 0.0
        %714 = vmatpush1.msra.mxu0 %v667
        %715 = vmatprep.subr.mxu0 0.0
        %716 = vmatpush1.msra.mxu0 %v668
        %717 = vmatprep.subr.mxu0 0.0
        %718 = vmatpush1.msra.mxu0 %v669
        %719 = vmatprep.subr.mxu0 0.0
        %720 = vmatpush1.msra.mxu0 %v670
        %721 = vmatprep.subr.mxu0 0.0
        %722 = vmatpush1.msra.mxu0 %v671
        %723 = vmatprep.subr.mxu0 0.0
        %724 = vmatpush1.msra.mxu0 %v672
        %725 = vmatprep.subr.mxu0 0.0
        %726 = vmatpush1.msra.mxu0 %v673
        %727 = vmatprep.subr.mxu0 0.0
        %728 = vmatpush1.msra.mxu0 %v674
        %729 = vmatprep.subr.mxu0 0.0
        %730 = vmatpush1.msra.mxu0 %v675
        %731 = vmatprep.subr.mxu0 0.0
        %732 = vmatpush1.msra.mxu0 %v676
        %733 = vmatprep.subr.mxu0 0.0
        %734 = vmatpush1.msra.mxu0 %v677
        %735 = vmatprep.subr.mxu0 0.0
        %736 = vmatpush1.msra.mxu0 %v678
        %737 = vmatprep.subr.mxu0 0.0
        %738 = vmatpush1.msra.mxu0 %v679
        %739 = vmatprep.subr.mxu0 0.0
        %740 = vmatpush1.msra.mxu0 %v680
        %741 = vmatprep.subr.mxu0 0.0
        %742 = vmatpush1.msra.mxu0 %v681
        %743 = vmatprep.subr.mxu0 0.0
        %744 = vmatpush1.msra.mxu0 0.0
        %745 = vmatprep.subr.mxu0 0.0
        %746 = vmatpush1.msra.mxu0 0.0
        %747 = vmatprep.subr.mxu0 0.0
        %748 = vmatpush1.msra.mxu0 0.0
        %749 = vmatprep.subr.mxu0 0.0
        %750 = vmatpush1.msra.mxu0 0.0
        %751 = vmatprep.subr.mxu0 0.0
        %752 = vmatpush1.msra.mxu0 0.0
        %753 = vmatprep.subr.mxu0 0.0
        %754 = vmatpush1.msra.mxu0 0.0
        %755 = vmatprep.subr.mxu0 0.0
        %756 = vmatpush1.msra.mxu0 0.0
        %757 = vmatprep.subr.mxu0 0.0
        %758 = vmatpush1.msra.mxu0 0.0
        %759 = vmatprep.mubr.f32.mxu0 %v690
        %760 = vmatmul.mubr.f32.gmra.mrb[0].mxu0 %v656
        %v761 = vpop.f32.mrb[0].mxu0
        %v762 = vadd.f32 %v687, %v761
        %v763 = vpop.f32.mrb[0].mxu0
        %764 = vmatprep.mubr.f32.mxu0 %v693
        %765 = vmatmul.mubr.f32.gmra.mrb[0].mxu0 %v657
        %v766 = vpop.f32.mrb[0].mxu0
        %v767 = vadd.f32 %v687, %v766
        %v768 = vpop.f32.mrb[0].mxu0
        %769 = vdwg.mxu0
        %770 = vst [vmem:[%s353] sm:$0xff] %v762
        %771 = vst [vmem:[%s353 + $0x8] sm:$0xff] %v767
        %s772 = sand.u32 %s180, 1
        %s773 = scalar_lea.sflag [#allocation4], %s772
        %s774 = sand.u32 %s180, 1
        %s775 = smul.addr %s774, 16
        %s776 = scalar_lea.vmem [#allocation8], %s775
        // Predicated region
        $region57: #{tpu_custom_call.1} parent=43 // pred_check
          %p777 = pneg %p190
        $region58: #{tpu_custom_call.1} parent=43 // pred_check_branch
          %779 = sbr.rel (%p777) target = $region60
        $region59: #{tpu_custom_call.1} parent=43 // pred_region
          %s781 = ssub.s32 256, 256
          %782 = vsyncadd %s773, %s781
          %s783 = smul.addr %s26, 2
          %s784 = smul.addr %s783, 128
          %s785 = scalar_lea.hbm %s6, %s784
          %s786 = sshll.u32 %s776, 4
          %s787 = int_to_ptr.vmem [resolvable:$true] %s786
          %792 = dma.vmem_to_hbm [thread:$0]  %s787, 256, %s785, %s773, 128, 128, 8
        $region60: #{tpu_custom_call.1} parent=43 // pred_fallthru
          _
      $region44: #{tpu_custom_call.1} parent=5 // pred_fallthru
        _
      %p793 = scmp.le.s32.totalorder 2, %s21
      // Predicated region
      $region61: #{tpu_custom_call.1} parent=5 // pred_check
        %p794 = pneg %p793
      $region62: #{tpu_custom_call.1} parent=5 // pred_check_branch
        %796 = sbr.rel (%p794) target = $region64
      $region63: #{tpu_custom_call.1} parent=5 // pred_region
        %s797 = ssub.s32 %s21, 2
        // Predicated region
        $region65: #{tpu_custom_call.1} parent=63 // pred_check
          %p798 = pneg %p196
        $region66: #{tpu_custom_call.1} parent=63 // pred_check_branch
          %800 = sbr.rel (%p798) target = $region68
        $region67: #{tpu_custom_call.1} parent=63 // pred_region
          %s801 = sand.u32 %s181, 1
          %s802 = scalar_lea.sflag [#allocation4], %s801
          %s803 = sand.u32 %s181, 1
          %s804 = smul.addr %s803, 16
          %s805 = scalar_lea.vmem [#allocation8], %s804
          %806 = dma.done %s802, 256
        $region68: #{tpu_custom_call.1} parent=63 // pred_fallthru
          _
      $region64: #{tpu_custom_call.1} parent=5 // pred_fallthru
        _
    $region6: #{tpu_custom_call.1} parent=1 // loop_footer
      %s25 = sadd.s32 1, %s21
    $region7: #{tpu_custom_call.1} parent=1 // loop_footer_branch
      %20 = sbr.rel target = $region3
    $region8: #{tpu_custom_call.1} parent=1 // loop_exit
      _
    %807 = vsyncpa [#allocation3], 1
    %s808 = scalar_lea.sflag [#allocation3], 1
    %809 = vsyncpa %s808, 1
    %810 = vsyncpa [#allocation6], 1
    %s811 = scalar_lea.sflag [#allocation6], 1
    %812 = vsyncpa %s811, 1
    %813 = vsyncpa [#allocation4], 1
    %s814 = scalar_lea.sflag [#allocation4], 1
    %815 = vsyncpa %s814, 1

</llo_original>
